<compile_context>
chip_gen: v7x
topology: tpu7x:2x2x1
jax: 0.10.0
libtpu: 0.0.40
codegen_flags: <defaults>
</compile_context>

<pallas_src>
import functools

import jax
import jax.numpy as jnp
from jax.experimental import pallas as pl
from jax.experimental.pallas import tpu as pltpu

LANE = 128        # hidden lane width (hidden_dim <= 128)
SD_PAD = 16       # padded input-feature width (state_dim <= 16); 1 bf16 / 2 f32 sublane tiles
OUT_PAD = 8       # padded output width (action_dim <= 8)
_W1_OFF, _W2_OFF, _W3_OFF = 0, 128, 256
_SLAB_ROWS = 384  # 3 x 128 — multiple of 8 (f32) and 16 (bf16) sublane tiling


def _mlp_kernel(x_ref, w_ref, b_ref, o_ref):
    """One batch tile: (tb,16)x(16,128) -> (tb,128)x(128,128) -> (tb,128)x(128,128)."""
    w_dtype = w_ref.dtype
    x = x_ref[...]                                    # (tb, SD_PAD)

    # Tile-aligned static views into the packed weight slab (no data movement).
    w1 = w_ref[_W1_OFF:_W1_OFF + SD_PAD, :]           # (16, 128), rows >= state_dim are 0
    w2 = w_ref[_W2_OFF:_W2_OFF + LANE, :]              # (128, 128)
    w3 = w_ref[_W3_OFF:_W3_OFF + LANE, :]              # (128, 128)
    b1 = b_ref[0:1, :]                                 # f32 (1, 128)
    b2 = b_ref[1:2, :]
    b3 = b_ref[2:3, :]

    # Layer 1: MXU matmul (f32 accumulate) + f32 bias + ReLU on the VPU.
    h1 = jnp.dot(x, w1, preferred_element_type=jnp.float32) + b1
    h1 = jnp.maximum(h1, 0.0).astype(w_dtype)
    # Layer 2
    h2 = jnp.dot(h1, w2, preferred_element_type=jnp.float32) + b2
    h2 = jnp.maximum(h2, 0.0).astype(w_dtype)
    # Layer 3 (no activation); store only the meaningful first OUT_PAD lanes.
    out = jnp.dot(h2, w3, preferred_element_type=jnp.float32) + b3
    o_ref[...] = out[:, :OUT_PAD].astype(o_ref.dtype)


def pack_params(params, dtype=jnp.float32):
    """Pack weights into one zero-padded (384,128) slab (dtype) + biases into (8,128) f32.

    Weights are (in_features, out_features) — the transpose of nn.Linear's (out, in)
    layout — and biases may be (out,) or (1, out).
    """
    w1, b1, w2, b2, w3, b3 = (params[k] for k in ("w1", "b1", "w2", "b2", "w3", "b3"))
    assert w1.shape[0] <= SD_PAD and w1.shape[1] <= LANE
    assert w2.shape[0] <= LANE and w2.shape[1] <= LANE
    assert w3.shape[0] <= LANE and w3.shape[1] <= OUT_PAD

    wslab = jnp.zeros((_SLAB_ROWS, LANE), jnp.float32)
    wslab = wslab.at[_W1_OFF:_W1_OFF + w1.shape[0], :w1.shape[1]].set(w1)
    wslab = wslab.at[_W2_OFF:_W2_OFF + w2.shape[0], :w2.shape[1]].set(w2)
    wslab = wslab.at[_W3_OFF:_W3_OFF + w3.shape[0], :w3.shape[1]].set(w3)

    bslab = jnp.zeros((8, LANE), jnp.float32)          # biases stay exact f32 always
    bslab = bslab.at[0, :w1.shape[1]].set(jnp.reshape(b1, (-1,)))
    bslab = bslab.at[1, :w2.shape[1]].set(jnp.reshape(b2, (-1,)))
    bslab = bslab.at[2, :w3.shape[1]].set(jnp.reshape(b3, (-1,)))
    return wslab.astype(dtype), bslab


def _round_up(n, m):
    return (n + m - 1) // m * m


def _pick_tile(batch):
    """Batch-tile rows per grid step (multiple of 8)."""
    b8 = _round_up(batch, 8)
    if b8 <= 128:
        return b8                         # one step: pure launch-overhead regime
    if b8 <= 2048:
        return _round_up(b8 // 2, 8)      # exactly 2 big steps -> both v7x TCs busy
    return 1024                           # large batches: amortize per-step overhead


@functools.partial(jax.jit, static_argnames=("action_dim",))
def cartpole_qnetwork_forward(x, w_slab, b_slab, action_dim):
    """x: (B, state_dim) f32. (w_slab, b_slab) from pack_params(). Returns (B, action_dim) f32."""
    B, state_dim = x.shape
    dtype = w_slab.dtype

    tb = _pick_tile(B)
    b_pad = _round_up(B, tb)

    # Narrow zero-padded input (16 lanes) — ~8x less traffic than a 128-lane pad.
    x_pad = jnp.zeros((b_pad, SD_PAD), dtype).at[:B, :state_dim].set(x.astype(dtype))

    itemsize = jnp.dtype(dtype).itemsize
    cost = pl.CostEstimate(
        flops=2 * b_pad * (SD_PAD * LANE + LANE * LANE + LANE * LANE),
        transcendentals=0,
        bytes_accessed=b_pad * SD_PAD * itemsize       # x
        + _SLAB_ROWS * LANE * itemsize                 # weights
        + 8 * LANE * 4                                 # biases (f32)
        + b_pad * OUT_PAD * 4,                         # f32 output
    )

    out = pl.pallas_call(
        _mlp_kernel,
        out_shape=jax.ShapeDtypeStruct((b_pad, OUT_PAD), jnp.float32),
        grid=(b_pad // tb,),
        in_specs=[
            pl.BlockSpec((tb, SD_PAD), lambda i: (i, 0)),            # x tile (last dim = full)
            pl.BlockSpec((_SLAB_ROWS, LANE), lambda i: (0, 0)),      # whole weight slab
            pl.BlockSpec((8, LANE), lambda i: (0, 0)),               # f32 biases
        ],
        out_specs=pl.BlockSpec((tb, OUT_PAD), lambda i: (i, 0)),     # narrow output slab
        compiler_params=pltpu.CompilerParams(dimension_semantics=("parallel",)),
        cost_estimate=cost,
    )(x_pad, w_slab, b_slab)

    return out[:B, :action_dim]


def init_params(key, state_dim, action_dim, hidden_dim=64):
    """Mirror nn.Linear's U(-1/sqrt(fan_in), 1/sqrt(fan_in)) init; weights stored (in, out)."""
    ks = jax.random.split(key, 6)

    def linear(kw, kb, fan_in, fan_out):
        bound = 1.0 / jnp.sqrt(jnp.float32(fan_in))
        w = jax.random.uniform(kw, (fan_in, fan_out), jnp.float32, -bound, bound)
        b = jax.random.uniform(kb, (1, fan_out), jnp.float32, -bound, bound)
        return w, b

    w1, b1 = linear(ks[0], ks[1], state_dim, hidden_dim)
    w2, b2 = linear(ks[2], ks[3], hidden_dim, hidden_dim)
    w3, b3 = linear(ks[4], ks[5], hidden_dim, action_dim)
    return dict(w1=w1, b1=b1, w2=w2, b2=b2, w3=w3, b3=b3)


def reference_forward(x, params):
    h = jnp.maximum(x @ params["w1"] + params["b1"], 0.0)
    h = jnp.maximum(h @ params["w2"] + params["b2"], 0.0)
    return h @ params["w3"] + params["b3"]


if __name__ == "__main__":
    # CartPole-v1 sizes: state_dim=4, action_dim=2, hidden_dim=64.
    state_dim, action_dim, hidden_dim = 4, 2, 64

    key = jax.random.PRNGKey(0)
    k_x, k_p = jax.random.split(key)
    params = init_params(k_p, state_dim, action_dim, hidden_dim)
    ref_fn = reference_forward

    w_f32, b_f32 = pack_params(params, jnp.float32)     # exact path
    w_bf16, b_bf16 = pack_params(params, jnp.bfloat16)  # bf16 matmul operands, f32 acc/bias

    # batch=2 exercises the single-tile path; batch=300 exercises the 2-step
    # "parallel" grid with a non-multiple-of-tile batch (padded rows discarded).
    for batch in (2, 300):
        x = jax.random.normal(jax.random.fold_in(k_x, batch), (batch, state_dim),
                              dtype=jnp.float32)
        ref = ref_fn(x, params)

        out = cartpole_qnetwork_forward(x, w_f32, b_f32, action_dim)
        jax.block_until_ready(out)
        assert out.shape == (batch, action_dim)
        assert jnp.allclose(out, ref, atol=1e-5, rtol=1e-5)

        out_bf16 = cartpole_qnetwork_forward(x, w_bf16, b_bf16, action_dim)
        jax.block_until_ready(out_bf16)
        assert jnp.allclose(out_bf16, ref, atol=1e-1, rtol=5e-2)

    print("KERNEL_OK")
</pallas_src>

<mosaic_0001>
module attributes {stable_mosaic.version = 11 : i64} {
  func.func @_mlp_kernel(%arg0: i32, %arg1: memref<8x16xf32, #tpu.memory_space<vmem>>, %arg2: memref<384x128xf32, #tpu.memory_space<vmem>>, %arg3: memref<8x128xf32, #tpu.memory_space<vmem>>, %arg4: memref<8x8xf32, #tpu.memory_space<vmem>>) attributes {dimension_semantics = [#tpu.dimension_semantics<parallel>], iteration_bounds = array<i64: 1>, scalar_prefetch = 0 : i64, scratch_operands = 0 : i64, tpu.core_type = #tpu.core_type<tc>, window_params = [{transform_indices = @transform_0, window_bounds = array<i64: 8, 16>}, {pipeline_mode = #tpu.pipeline_mode<synchronous>, transform_indices = @transform_1, window_bounds = array<i64: 384, 128>}, {pipeline_mode = #tpu.pipeline_mode<synchronous>, transform_indices = @transform_2, window_bounds = array<i64: 8, 128>}, {transform_indices = @transform_3, window_bounds = array<i64: 8, 8>}]} {
    %c0 = arith.constant 0 : index
    %c0_0 = arith.constant 0 : index
    %0 = vector.load %arg1[%c0, %c0_0] : memref<8x16xf32, #tpu.memory_space<vmem>>, vector<8x16xf32>
    %c0_1 = arith.constant 0 : index
    %c0_2 = arith.constant 0 : index
    %1 = vector.load %arg2[%c0_1, %c0_2] : memref<384x128xf32, #tpu.memory_space<vmem>>, vector<16x128xf32>
    %c128 = arith.constant 128 : index
    %c0_3 = arith.constant 0 : index
    %2 = vector.load %arg2[%c128, %c0_3] : memref<384x128xf32, #tpu.memory_space<vmem>>, vector<128x128xf32>
    %c256 = arith.constant 256 : index
    %c0_4 = arith.constant 0 : index
    %3 = vector.load %arg2[%c256, %c0_4] : memref<384x128xf32, #tpu.memory_space<vmem>>, vector<128x128xf32>
    %c0_5 = arith.constant 0 : index
    %c0_6 = arith.constant 0 : index
    %4 = vector.load %arg3[%c0_5, %c0_6] : memref<8x128xf32, #tpu.memory_space<vmem>>, vector<1x128xf32>
    %c1 = arith.constant 1 : index
    %c0_7 = arith.constant 0 : index
    %5 = vector.load %arg3[%c1, %c0_7] : memref<8x128xf32, #tpu.memory_space<vmem>>, vector<1x128xf32>
    %c2 = arith.constant 2 : index
    %c0_8 = arith.constant 0 : index
    %6 = vector.load %arg3[%c2, %c0_8] : memref<8x128xf32, #tpu.memory_space<vmem>>, vector<1x128xf32>
    %cst = arith.constant dense<0.000000e+00> : vector<8x128xf32>
    %7 = tpu.matmul %0, %1, %cst {dimension_numbers = #tpu.dot_dimension_numbers<[1], [0], [0], [1], [0, 0, 1, 1], [], []>} : vector<8x16xf32>, vector<16x128xf32>, vector<8x128xf32> -> vector<8x128xf32>
    %8 = vector.broadcast %4 : vector<1x128xf32> to vector<8x128xf32>
    %9 = arith.addf %7, %8 : vector<8x128xf32>
    %cst_9 = arith.constant 0.000000e+00 : f32
    %10 = vector.broadcast %cst_9 : f32 to vector<8x128xf32>
    %11 = arith.maximumf %9, %10 : vector<8x128xf32>
    %cst_10 = arith.constant dense<0.000000e+00> : vector<8x128xf32>
    %12 = tpu.matmul %11, %2, %cst_10 {dimension_numbers = #tpu.dot_dimension_numbers<[1], [0], [0], [1], [0, 0, 1, 1], [], []>} : vector<8x128xf32>, vector<128x128xf32>, vector<8x128xf32> -> vector<8x128xf32>
    %13 = vector.broadcast %5 : vector<1x128xf32> to vector<8x128xf32>
    %14 = arith.addf %12, %13 : vector<8x128xf32>
    %cst_11 = arith.constant 0.000000e+00 : f32
    %15 = vector.broadcast %cst_11 : f32 to vector<8x128xf32>
    %16 = arith.maximumf %14, %15 : vector<8x128xf32>
    %cst_12 = arith.constant dense<0.000000e+00> : vector<8x128xf32>
    %17 = tpu.matmul %16, %3, %cst_12 {dimension_numbers = #tpu.dot_dimension_numbers<[1], [0], [0], [1], [0, 0, 1, 1], [], []>} : vector<8x128xf32>, vector<128x128xf32>, vector<8x128xf32> -> vector<8x128xf32>
    %18 = vector.broadcast %6 : vector<1x128xf32> to vector<8x128xf32>
    %19 = arith.addf %17, %18 : vector<8x128xf32>
    %20 = vector.extract_strided_slice %19 {offsets = [0, 0], sizes = [8, 8], strides = [1, 1]} : vector<8x128xf32> to vector<8x8xf32>
    %c0_13 = arith.constant 0 : index
    %c0_14 = arith.constant 0 : index
    %21 = vector.load %arg4[%c0_13, %c0_14] : memref<8x8xf32, #tpu.memory_space<vmem>>, vector<8x8xf32>
    tpu.vector_store %arg4[%c0_13, %c0_14], %20 {strides = array<i32>} : memref<8x8xf32, #tpu.memory_space<vmem>>, vector<8x8xf32>,
    return
  }
  func.func @transform_0(%arg0: i32) -> (i32, i32) {
    %c0_i32 = arith.constant 0 : i32
    %c0_i32_0 = arith.constant 0 : i32
    return %arg0, %c0_i32 : i32, i32
  }
  func.func @transform_1(%arg0: i32) -> (i32, i32) {
    %c0_i32 = arith.constant 0 : i32
    %c0_i32_0 = arith.constant 0 : i32
    %c0_i32_1 = arith.constant 0 : i32
    return %c0_i32, %c0_i32_0 : i32, i32
  }
  func.func @transform_2(%arg0: i32) -> (i32, i32) {
    %c0_i32 = arith.constant 0 : i32
    %c0_i32_0 = arith.constant 0 : i32
    %c0_i32_1 = arith.constant 0 : i32
    return %c0_i32, %c0_i32_0 : i32, i32
  }
  func.func @transform_3(%arg0: i32) -> (i32, i32) {
    %c0_i32 = arith.constant 0 : i32
    %c0_i32_0 = arith.constant 0 : i32
    return %arg0, %c0_i32 : i32, i32
  }
}

</mosaic_0001>

<llo_original>
// kernel: cartpole_qnetwork_forward.1
$region0: #{cartpole_qnetwork_forward.1}
  #allocation0 [shape = 'u32[]', space=smem, size = 0x4, offset = 0x4, fixed_abs, tag = 'smem constant byte address 0x4 - core index']
  #allocation1 [shape = 'u32[144,128]{1,0:T(1,128)}', space=vmem, size = 0x12000, scoped, tag = 'internal scratch']
  %s0 = inlined_call_operand.vmem [shape: f32[8,16], index: 0, kind: input, shape index: {}]
  %s1 = inlined_call_operand.hbm [shape: f32[384,128], index: 1, kind: input, shape index: {}]
  %s2 = inlined_call_operand.vmem [shape: f32[8,128], index: 2, kind: input, shape index: {}]
  %s3 = inlined_call_operand.vmem [shape: f32[8,8], index: 3, kind: output, shape index: {}]
  %s4 = sld [smem:[#allocation0]]
  $region26: #{cartpole_qnetwork_forward.1} parent=0
    _
  %s6 = ssub.s32 1, %s4
  %s7 = scalar_select 0, %s6, %s4
  $region1: #{cartpole_qnetwork_forward.1} parent=0
    #allocation2 [shape = 'u8[196608]{0}', space=vmem, size = 0x30000, scoped, tag = 'input window, operand 1, single buffered']
    #allocation3 [shape = 's32[1]{0}', space=sflag, size = 0x4, scoped, tag = 'scoped memory for cartpole_qnetwork_forward.1']
    %8 = vsyncpa [#allocation3], 0
    // Predicated region
    $region2: #{cartpole_qnetwork_forward.1} parent=1 // pred_check
      _
    $region3: #{cartpole_qnetwork_forward.1} parent=1 // pred_check_branch
      %10 = sbr.rel (0) target = $region5
    $region4: #{cartpole_qnetwork_forward.1} parent=1 // pred_region
      _
    $region5: #{cartpole_qnetwork_forward.1} parent=1 // pred_fallthru
      _
    // Predicated region
    $region6: #{cartpole_qnetwork_forward.1} parent=1 // pred_check
      _
    $region7: #{cartpole_qnetwork_forward.1} parent=1 // pred_check_branch
      %12 = sbr.rel (0) target = $region9
    $region8: #{cartpole_qnetwork_forward.1} parent=1 // pred_region
      %s14 = ssub.s32 6144, 6144
      %15 = vsyncadd [#allocation3], %s14
      %s16 = sshll.u32 [#allocation2], 4
      %s17 = int_to_ptr.vmem [resolvable:$true] %s16
      %22 = dma.hbm_to_vmem [thread:$0]  %s1, 6144, %s17, [#allocation3], 128, 128, 8
    $region9: #{cartpole_qnetwork_forward.1} parent=1 // pred_fallthru
      _
    // Predicated region
    $region10: #{cartpole_qnetwork_forward.1} parent=1 // pred_check
      _
    $region11: #{cartpole_qnetwork_forward.1} parent=1 // pred_check_branch
      %24 = sbr.rel (0) target = $region13
    $region12: #{cartpole_qnetwork_forward.1} parent=1 // pred_region
      _
    $region13: #{cartpole_qnetwork_forward.1} parent=1 // pred_fallthru
      _
    // Predicated region
    $region14: #{cartpole_qnetwork_forward.1} parent=1 // pred_check
      _
    $region15: #{cartpole_qnetwork_forward.1} parent=1 // pred_check_branch
      %26 = sbr.rel (0) target = $region17
    $region16: #{cartpole_qnetwork_forward.1} parent=1 // pred_region
      %27 = dma.done [#allocation3], 6144
    $region17: #{cartpole_qnetwork_forward.1} parent=1 // pred_fallthru
      _
    %v28 = vld [vmem:[%s0] sm:$0xff]
    %v29 = vld [vmem:[#allocation2] sm:$0xff]
    %v30 = vld [vmem:[#allocation2 + $0x8] sm:$0xff]
    %v31 = vld [vmem:[#allocation2 + $0x80] sm:$0xff]
    %v32 = vld [vmem:[#allocation2 + $0x88] sm:$0xff]
    %v33 = vld [vmem:[#allocation2 + $0x90] sm:$0xff]
    %v34 = vld [vmem:[#allocation2 + $0x98] sm:$0xff]
    %v35 = vld [vmem:[#allocation2 + $0xa0] sm:$0xff]
    %v36 = vld [vmem:[#allocation2 + $0xa8] sm:$0xff]
    %v37 = vld [vmem:[#allocation2 + $0xb0] sm:$0xff]
    %v38 = vld [vmem:[#allocation2 + $0xb8] sm:$0xff]
    %v39 = vld [vmem:[#allocation2 + $0xc0] sm:$0xff]
    %v40 = vld [vmem:[#allocation2 + $0xc8] sm:$0xff]
    %v41 = vld [vmem:[#allocation2 + $0xd0] sm:$0xff]
    %v42 = vld [vmem:[#allocation2 + $0xd8] sm:$0xff]
    %v43 = vld [vmem:[#allocation2 + $0xe0] sm:$0xff]
    %v44 = vld [vmem:[#allocation2 + $0xe8] sm:$0xff]
    %v45 = vld [vmem:[#allocation2 + $0xf0] sm:$0xff]
    %v46 = vld [vmem:[#allocation2 + $0xf8] sm:$0xff]
    %v47 = vld [vmem:[#allocation2 + $0x100] sm:$0xff]
    %v48 = vld [vmem:[#allocation2 + $0x108] sm:$0xff]
    %v49 = vld [vmem:[#allocation2 + $0x110] sm:$0xff]
    %v50 = vld [vmem:[#allocation2 + $0x118] sm:$0xff]
    %v51 = vld [vmem:[#allocation2 + $0x120] sm:$0xff]
    %v52 = vld [vmem:[#allocation2 + $0x128] sm:$0xff]
    %v53 = vld [vmem:[#allocation2 + $0x130] sm:$0xff]
    %v54 = vld [vmem:[#allocation2 + $0x138] sm:$0xff]
    %v55 = vld [vmem:[#allocation2 + $0x140] sm:$0xff]
    %v56 = vld [vmem:[#allocation2 + $0x148] sm:$0xff]
    %v57 = vld [vmem:[#allocation2 + $0x150] sm:$0xff]
    %v58 = vld [vmem:[#allocation2 + $0x158] sm:$0xff]
    %v59 = vld [vmem:[#allocation2 + $0x160] sm:$0xff]
    %v60 = vld [vmem:[#allocation2 + $0x168] sm:$0xff]
    %v61 = vld [vmem:[#allocation2 + $0x170] sm:$0xff]
    %v62 = vld [vmem:[#allocation2 + $0x178] sm:$0xff]
    %v63 = vld [vmem:[%s2] sm:$0x1]
    %v64 = vld [vmem:[%s2 + $0x1] sm:$0x1]
    %v65 = vld [vmem:[%s2 + $0x2] sm:$0x1]
    %v66 = vlaneseq
    %v67 = vshrl.u32 %v66, 7
    %v68 = vsub.s32 0, %v67
    %v69 = vrot.slane %v63, %v68
    %vm70 = vcmask 130048
    %v72 = vsel %vm70, %v28, 0
    %74 = vmatprep.subr.mxu0 0.0
    %75 = vmatpush1.msra.mxu0 %v29
    %76 = vmatprep.subr.mxu0 0.0
    %77 = vmatpush1.msra.mxu0 %v30
    %78 = vmatprep.subr.mxu0 0.0
    %79 = vmatpush1.msra.mxu0 0.0
    %80 = vmatprep.subr.mxu0 0.0
    %81 = vmatpush1.msra.mxu0 0.0
    %82 = vmatprep.subr.mxu0 0.0
    %83 = vmatpush1.msra.mxu0 0.0
    %84 = vmatprep.subr.mxu0 0.0
    %85 = vmatpush1.msra.mxu0 0.0
    %86 = vmatprep.subr.mxu0 0.0
    %87 = vmatpush1.msra.mxu0 0.0
    %88 = vmatprep.subr.mxu0 0.0
    %89 = vmatpush1.msra.mxu0 0.0
    %90 = vmatprep.subr.mxu0 0.0
    %91 = vmatpush1.msra.mxu0 0.0
    %92 = vmatprep.subr.mxu0 0.0
    %93 = vmatpush1.msra.mxu0 0.0
    %94 = vmatprep.subr.mxu0 0.0
    %95 = vmatpush1.msra.mxu0 0.0
    %96 = vmatprep.subr.mxu0 0.0
    %97 = vmatpush1.msra.mxu0 0.0
    %98 = vmatprep.subr.mxu0 0.0
    %99 = vmatpush1.msra.mxu0 0.0
    %100 = vmatprep.subr.mxu0 0.0
    %101 = vmatpush1.msra.mxu0 0.0
    %102 = vmatprep.subr.mxu0 0.0
    %103 = vmatpush1.msra.mxu0 0.0
    %104 = vmatprep.subr.mxu0 0.0
    %105 = vmatpush1.msra.mxu0 0.0
    %106 = vmatprep.subr.mxu0 0.0
    %107 = vmatpush1.msra.mxu0 0.0
    %108 = vmatprep.subr.mxu0 0.0
    %109 = vmatpush1.msra.mxu0 0.0
    %110 = vmatprep.subr.mxu0 0.0
    %111 = vmatpush1.msra.mxu0 0.0
    %112 = vmatprep.subr.mxu0 0.0
    %113 = vmatpush1.msra.mxu0 0.0
    %114 = vmatprep.subr.mxu0 0.0
    %115 = vmatpush1.msra.mxu0 0.0
    %116 = vmatprep.subr.mxu0 0.0
    %117 = vmatpush1.msra.mxu0 0.0
    %118 = vmatprep.subr.mxu0 0.0
    %119 = vmatpush1.msra.mxu0 0.0
    %120 = vmatprep.subr.mxu0 0.0
    %121 = vmatpush1.msra.mxu0 0.0
    %122 = vmatprep.subr.mxu0 0.0
    %123 = vmatpush1.msra.mxu0 0.0
    %124 = vmatprep.subr.mxu0 0.0
    %125 = vmatpush1.msra.mxu0 0.0
    %126 = vmatprep.subr.mxu0 0.0
    %127 = vmatpush1.msra.mxu0 0.0
    %128 = vmatprep.subr.mxu0 0.0
    %129 = vmatpush1.msra.mxu0 0.0
    %130 = vmatprep.subr.mxu0 0.0
    %131 = vmatpush1.msra.mxu0 0.0
    %132 = vmatprep.subr.mxu0 0.0
    %133 = vmatpush1.msra.mxu0 0.0
    %134 = vmatprep.subr.mxu0 0.0
    %135 = vmatpush1.msra.mxu0 0.0
    %136 = vmatprep.subr.mxu0 0.0
    %137 = vmatpush1.msra.mxu0 0.0
    %138 = vmatprep.mubr.f32.mxu0 0.0
    %139 = vmatmul.mubr.f32.gmra.mrb[0].mxu0 %v72
    %v140 = vpop.f32.mrb[0].mxu0
    %v141 = vadd.f32 %v69, %v140
    %v142 = vpop.f32.mrb[0].mxu0
    %143 = vdwg.mxu0
    %v144 = vmax.f32 %v141, 0.0
    %v145 = vlaneseq
    %v146 = vshrl.u32 %v145, 7
    %v147 = vsub.s32 0, %v146
    %v148 = vrot.slane %v64, %v147
    %149 = vmatprep.subr.mxu0 0.0
    %150 = vmatpush1.msra.mxu0 %v31
    %151 = vmatprep.subr.mxu0 0.0
    %152 = vmatpush1.msra.mxu0 %v32
    %153 = vmatprep.subr.mxu0 0.0
    %154 = vmatpush1.msra.mxu0 %v33
    %155 = vmatprep.subr.mxu0 0.0
    %156 = vmatpush1.msra.mxu0 %v34
    %157 = vmatprep.subr.mxu0 0.0
    %158 = vmatpush1.msra.mxu0 %v35
    %159 = vmatprep.subr.mxu0 0.0
    %160 = vmatpush1.msra.mxu0 %v36
    %161 = vmatprep.subr.mxu0 0.0
    %162 = vmatpush1.msra.mxu0 %v37
    %163 = vmatprep.subr.mxu0 0.0
    %164 = vmatpush1.msra.mxu0 %v38
    %165 = vmatprep.subr.mxu0 0.0
    %166 = vmatpush1.msra.mxu0 %v39
    %167 = vmatprep.subr.mxu0 0.0
    %168 = vmatpush1.msra.mxu0 %v40
    %169 = vmatprep.subr.mxu0 0.0
    %170 = vmatpush1.msra.mxu0 %v41
    %171 = vmatprep.subr.mxu0 0.0
    %172 = vmatpush1.msra.mxu0 %v42
    %173 = vmatprep.subr.mxu0 0.0
    %174 = vmatpush1.msra.mxu0 %v43
    %175 = vmatprep.subr.mxu0 0.0
    %176 = vmatpush1.msra.mxu0 %v44
    %177 = vmatprep.subr.mxu0 0.0
    %178 = vmatpush1.msra.mxu0 %v45
    %179 = vmatprep.subr.mxu0 0.0
    %180 = vmatpush1.msra.mxu0 %v46
    %181 = vmatprep.subr.mxu0 0.0
    %182 = vmatpush1.msra.mxu0 0.0
    %183 = vmatprep.subr.mxu0 0.0
    %184 = vmatpush1.msra.mxu0 0.0
    %185 = vmatprep.subr.mxu0 0.0
    %186 = vmatpush1.msra.mxu0 0.0
    %187 = vmatprep.subr.mxu0 0.0
    %188 = vmatpush1.msra.mxu0 0.0
    %189 = vmatprep.subr.mxu0 0.0
    %190 = vmatpush1.msra.mxu0 0.0
    %191 = vmatprep.subr.mxu0 0.0
    %192 = vmatpush1.msra.mxu0 0.0
    %193 = vmatprep.subr.mxu0 0.0
    %194 = vmatpush1.msra.mxu0 0.0
    %195 = vmatprep.subr.mxu0 0.0
    %196 = vmatpush1.msra.mxu0 0.0
    %197 = vmatprep.subr.mxu0 0.0
    %198 = vmatpush1.msra.mxu0 0.0
    %199 = vmatprep.subr.mxu0 0.0
    %200 = vmatpush1.msra.mxu0 0.0
    %201 = vmatprep.subr.mxu0 0.0
    %202 = vmatpush1.msra.mxu0 0.0
    %203 = vmatprep.subr.mxu0 0.0
    %204 = vmatpush1.msra.mxu0 0.0
    %205 = vmatprep.subr.mxu0 0.0
    %206 = vmatpush1.msra.mxu0 0.0
    %207 = vmatprep.subr.mxu0 0.0
    %208 = vmatpush1.msra.mxu0 0.0
    %209 = vmatprep.subr.mxu0 0.0
    %210 = vmatpush1.msra.mxu0 0.0
    %211 = vmatprep.subr.mxu0 0.0
    %212 = vmatpush1.msra.mxu0 0.0
    %213 = vmatprep.mubr.f32.mxu0 0.0
    %214 = vmatmul.mubr.f32.gmra.mrb[0].mxu0 %v144
    %v215 = vpop.f32.mrb[0].mxu0
    %v216 = vadd.f32 %v148, %v215
    %v217 = vpop.f32.mrb[0].mxu0
    %218 = vdwg.mxu0
    %v219 = vmax.f32 %v216, 0.0
    %v220 = vlaneseq
    %v221 = vshrl.u32 %v220, 7
    %v222 = vsub.s32 0, %v221
    %v223 = vrot.slane %v65, %v222
    %224 = vmatprep.subr.mxu0 0.0
    %225 = vmatpush1.msra.mxu0 %v47
    %226 = vmatprep.subr.mxu0 0.0
    %227 = vmatpush1.msra.mxu0 %v48
    %228 = vmatprep.subr.mxu0 0.0
    %229 = vmatpush1.msra.mxu0 %v49
    %230 = vmatprep.subr.mxu0 0.0
    %231 = vmatpush1.msra.mxu0 %v50
    %232 = vmatprep.subr.mxu0 0.0
    %233 = vmatpush1.msra.mxu0 %v51
    %234 = vmatprep.subr.mxu0 0.0
    %235 = vmatpush1.msra.mxu0 %v52
    %236 = vmatprep.subr.mxu0 0.0
    %237 = vmatpush1.msra.mxu0 %v53
    %238 = vmatprep.subr.mxu0 0.0
    %239 = vmatpush1.msra.mxu0 %v54
    %240 = vmatprep.subr.mxu0 0.0
    %241 = vmatpush1.msra.mxu0 %v55
    %242 = vmatprep.subr.mxu0 0.0
    %243 = vmatpush1.msra.mxu0 %v56
    %244 = vmatprep.subr.mxu0 0.0
    %245 = vmatpush1.msra.mxu0 %v57
    %246 = vmatprep.subr.mxu0 0.0
    %247 = vmatpush1.msra.mxu0 %v58
    %248 = vmatprep.subr.mxu0 0.0
    %249 = vmatpush1.msra.mxu0 %v59
    %250 = vmatprep.subr.mxu0 0.0
    %251 = vmatpush1.msra.mxu0 %v60
    %252 = vmatprep.subr.mxu0 0.0
    %253 = vmatpush1.msra.mxu0 %v61
    %254 = vmatprep.subr.mxu0 0.0
    %255 = vmatpush1.msra.mxu0 %v62
    %256 = vmatprep.subr.mxu0 0.0
    %257 = vmatpush1.msra.mxu0 0.0
    %258 = vmatprep.subr.mxu0 0.0
    %259 = vmatpush1.msra.mxu0 0.0
    %260 = vmatprep.subr.mxu0 0.0
    %261 = vmatpush1.msra.mxu0 0.0
    %262 = vmatprep.subr.mxu0 0.0
    %263 = vmatpush1.msra.mxu0 0.0
    %264 = vmatprep.subr.mxu0 0.0
    %265 = vmatpush1.msra.mxu0 0.0
    %266 = vmatprep.subr.mxu0 0.0
    %267 = vmatpush1.msra.mxu0 0.0
    %268 = vmatprep.subr.mxu0 0.0
    %269 = vmatpush1.msra.mxu0 0.0
    %270 = vmatprep.subr.mxu0 0.0
    %271 = vmatpush1.msra.mxu0 0.0
    %272 = vmatprep.subr.mxu0 0.0
    %273 = vmatpush1.msra.mxu0 0.0
    %274 = vmatprep.subr.mxu0 0.0
    %275 = vmatpush1.msra.mxu0 0.0
    %276 = vmatprep.subr.mxu0 0.0
    %277 = vmatpush1.msra.mxu0 0.0
    %278 = vmatprep.subr.mxu0 0.0
    %279 = vmatpush1.msra.mxu0 0.0
    %280 = vmatprep.subr.mxu0 0.0
    %281 = vmatpush1.msra.mxu0 0.0
    %282 = vmatprep.subr.mxu0 0.0
    %283 = vmatpush1.msra.mxu0 0.0
    %284 = vmatprep.subr.mxu0 0.0
    %285 = vmatpush1.msra.mxu0 0.0
    %286 = vmatprep.subr.mxu0 0.0
    %287 = vmatpush1.msra.mxu0 0.0
    %288 = vmatprep.mubr.f32.mxu0 0.0
    %289 = vmatmul.mubr.f32.gmra.mrb[0].mxu0 %v219
    %v290 = vpop.f32.mrb[0].mxu0
    %v291 = vadd.f32 %v223, %v290
    %v292 = vpop.f32.mrb[0].mxu0
    %293 = vdwg.mxu0
    %vm294 = vcmask 64512
    %295 = vst.msk [vmem:[%s3] sm:$0xff] %vm294, %v291
    // Predicated region
    $region18: #{cartpole_qnetwork_forward.1} parent=1 // pred_check
      _
    $region19: #{cartpole_qnetwork_forward.1} parent=1 // pred_check_branch
      %297 = sbr.rel (0) target = $region21
    $region20: #{cartpole_qnetwork_forward.1} parent=1 // pred_region
      _
    $region21: #{cartpole_qnetwork_forward.1} parent=1 // pred_fallthru
      _
    // Predicated region
    $region22: #{cartpole_qnetwork_forward.1} parent=1 // pred_check
      _
    $region23: #{cartpole_qnetwork_forward.1} parent=1 // pred_check_branch
      %299 = sbr.rel (0) target = $region25
    $region24: #{cartpole_qnetwork_forward.1} parent=1 // pred_region
      _
    $region25: #{cartpole_qnetwork_forward.1} parent=1 // pred_fallthru
      _
    %300 = vsyncpa [#allocation3], 1

</llo_original>
